<compile_context>
chip_gen: v7x
topology: tpu7x:2x2x1
jax: 0.10.0
libtpu: 0.0.40
codegen_flags: <defaults>
</compile_context>

<pallas_src>
import functools

import jax
import jax.numpy as jnp
from jax.experimental import pallas as pl
from jax.experimental.pallas import tpu as pltpu


def _round_up(x, m):
    return ((x + m - 1) // m) * m


def _gext_output_kernel(x_ref, w_ref, b_ref, res_ref, o_ref, acc_ref):
    # x_ref:   (tm, tk)  activation tile (bf16)
    # w_ref:   (tk, tn)  weight tile, stored K-major (transpose of nn.Linear weight)
    # b_ref:   (1,  tn)  bias tile
    # res_ref: (tm, tn)  residual tile
    # o_ref:   (tm, tn)  output tile
    # acc_ref: (tm, tn)  f32 accumulator scratch (resident across the K axis)
    k = pl.program_id(2)

    @pl.when(k == 0)
    def _():
        # Fold bias + residual into the accumulator init; dropout is identity
        # in eval mode, so no masking is applied.
        acc_ref[...] = (
            res_ref[...].astype(jnp.float32) + b_ref[...].astype(jnp.float32)
        )

    acc_ref[...] += jnp.dot(
        x_ref[...], w_ref[...], preferred_element_type=jnp.float32
    )

    @pl.when(k == pl.num_programs(2) - 1)
    def _():
        o_ref[...] = acc_ref[...].astype(o_ref.dtype)


@functools.partial(
    jax.jit, static_argnames=("tile_m", "tile_n", "tile_k", "cast_to_bf16")
)
def gext_output(hidden_states, weight_t, bias, input_tensor,
                tile_m=512, tile_n=1024, tile_k=1024, cast_to_bf16=True):
    """hidden_states: [B, S, K]; weight_t: [K, N]; bias: [N]; input_tensor: [B, S, N]."""
    B, S, K = hidden_states.shape
    Kw, N = weight_t.shape
    assert Kw == K
    assert input_tensor.shape == (B, S, N)
    M = B * S

    out_dtype = jnp.result_type(hidden_states.dtype, input_tensor.dtype)

    x2d = hidden_states.reshape(M, K)
    r2d = input_tensor.reshape(M, N)
    b2d = bias.reshape(1, N)
    w2d = weight_t

    # MXU operands in bf16 (native MXU input on v5e/v6e/v7x), f32 accumulation.
    if cast_to_bf16 and x2d.dtype == jnp.float32:
        x2d = x2d.astype(jnp.bfloat16)
    if cast_to_bf16 and w2d.dtype == jnp.float32:
        w2d = w2d.astype(jnp.bfloat16)

    # Sublane alignment of the M tile: bf16 packs 16 rows per sublane group.
    m_align = 16 if x2d.dtype == jnp.bfloat16 else 8

    tm = min(tile_m, _round_up(M, m_align))
    Np = _round_up(N, 128)           # lane-dense output slab
    tn = min(tile_n, Np)
    tk = min(tile_k, _round_up(K, 128))

    # Prefer a K tile that divides K over zero-padding the full activation
    # matrix in HBM (an extra read+write of x and w before the kernel starts).
    if K % tk != 0 and K % 128 == 0:
        cand = tk
        while cand > 128 and K % cand != 0:
            cand -= 128
        tk = cand
    Kp = _round_up(K, tk)

    # Zero-pad only where required:
    #   K (reduction): padding must be exact zeros or the accumulation is wrong.
    #   N: pad to the next 128 only when N is not lane-aligned (small copy).
    # The M axis is never padded; the final partial M tile is over-read and its
    # stores are masked by Pallas.
    if Kp != K:
        x2d = jnp.pad(x2d, ((0, 0), (0, Kp - K)))
    if (Kp, Np) != (K, N):
        w2d = jnp.pad(w2d, ((0, Kp - K), (0, Np - N)))
    if Np != N:
        b2d = jnp.pad(b2d, ((0, 0), (0, Np - N)))
        r2d = jnp.pad(r2d, ((0, 0), (0, Np - N)))

    grid_m = pl.cdiv(M, tm)
    grid_n = pl.cdiv(Np, tn)
    grid_k = Kp // tk

    # v7x feeds its two TensorCores by sharding the "parallel" grid axes: keep
    # at least two parallel grid points when the problem is large enough.
    if grid_m * grid_n < 2 and M >= 512:
        tm = _round_up(pl.cdiv(M, 2), m_align)
        grid_m = pl.cdiv(M, tm)

    grid = (grid_m, grid_n, grid_k)

    # Explicit VMEM budget: double-buffered inputs/outputs + f32 accumulator.
    itm = lambda a: jnp.dtype(a.dtype).itemsize
    out_isz = jnp.dtype(out_dtype).itemsize
    vmem_bytes = 2 * (
        tm * tk * itm(x2d)
        + tk * tn * itm(w2d)
        + tn * itm(b2d)
        + tm * tn * itm(r2d)
        + tm * tn * out_isz
    ) + tm * tn * 4

    # Per-generation cap: ~80% of physical VMEM (≈51 MiB v7x, ≈102 MiB v5e/v6e)
    # leaves headroom for compiler-internal scratch.
    try:
        vmem_cap = int(pltpu.get_tpu_info().vmem_capacity_bytes)
    except Exception:
        vmem_cap = 64 << 20  # conservative fallback (v7x per-TensorCore VMEM)
    vmem_limit = int(min(vmem_bytes + (8 << 20), int(vmem_cap * 0.8)))
    vmem_limit = max(vmem_limit, 16 << 20)

    cost = pl.CostEstimate(
        flops=2 * M * K * N,
        transcendentals=0,
        bytes_accessed=(
            M * K * itm(x2d)
            + K * N * itm(w2d)
            + N * itm(b2d)
            + M * N * itm(r2d)
            + M * N * out_isz
        ),
    )

    # TODO(synk): if profiling shows exposed DMA on the K loop (small-M,
    # weight-stream bound shapes), try pipeline_mode=pl.Buffered(3) on the
    # activation/weight specs; VMEM headroom is ample.
    out2d = pl.pallas_call(
        _gext_output_kernel,
        out_shape=jax.ShapeDtypeStruct((M, Np), out_dtype),
        grid_spec=pltpu.PrefetchScalarGridSpec(
            num_scalar_prefetch=0,
            grid=grid,
            in_specs=[
                pl.BlockSpec((tm, tk), lambda i, j, k: (i, k)),  # activations
                pl.BlockSpec((tk, tn), lambda i, j, k: (k, j)),  # weight (K-major)
                pl.BlockSpec((1, tn), lambda i, j, k: (0, j)),   # bias
                pl.BlockSpec((tm, tn), lambda i, j, k: (i, j)),  # residual
            ],
            out_specs=pl.BlockSpec((tm, tn), lambda i, j, k: (i, j)),
            scratch_shapes=[pltpu.VMEM((tm, tn), jnp.float32)],
        ),
        compiler_params=pltpu.CompilerParams(
            dimension_semantics=("parallel", "parallel", "arbitrary"),
            vmem_limit_bytes=vmem_limit,
        ),
        cost_estimate=cost,
    )(x2d, w2d, b2d, r2d)

    return out2d[:, :N].reshape(B, S, N)


def reference_bf16(hidden_states, weight_t, bias, input_tensor):
    """Reference with the same bf16 operand rounding + f32 accumulation."""
    x = hidden_states.astype(jnp.bfloat16).astype(jnp.float32)
    w = weight_t.astype(jnp.bfloat16).astype(jnp.float32)
    return jnp.einsum("bsk,kn->bsn", x, w) + bias + input_tensor


if __name__ == "__main__":
    # Small config consistent with the module's forward.
    batch, seq = 2, 8
    intermediate_size = 128   # config.intermediate_size
    hidden_size = 32          # config.hidden_size

    key = jax.random.PRNGKey(0)
    k_x, k_w, k_b, k_r = jax.random.split(key, 4)

    hidden_states = jax.random.normal(
        k_x, (batch, seq, intermediate_size), dtype=jnp.float32)
    input_tensor = jax.random.normal(
        k_r, (batch, seq, hidden_size), dtype=jnp.float32)

    # nn.Linear params (weight [N, K], bias [N]); stored transposed as [K, N].
    bound = 1.0 / (intermediate_size ** 0.5)
    weight_t = jax.random.uniform(
        k_w, (intermediate_size, hidden_size), dtype=jnp.float32,
        minval=-bound, maxval=bound)
    bias = jax.random.uniform(
        k_b, (hidden_size,), dtype=jnp.float32, minval=-bound, maxval=bound)

    out = gext_output(hidden_states, weight_t, bias, input_tensor)
    out = jax.block_until_ready(out)

    ref = reference_bf16(hidden_states, weight_t, bias, input_tensor)
    assert out.shape == (batch, seq, hidden_size)
    assert jnp.allclose(out, ref, atol=2e-3, rtol=2e-3), "mismatch vs reference"

    print("KERNEL_OK")
</pallas_src>

<mosaic_0001>
module attributes {stable_mosaic.version = 11 : i64} {
  func.func @_gext_output_kernel(%arg0: i32, %arg1: i32, %arg2: i32, %arg3: memref<16x128xbf16, #tpu.memory_space<vmem>>, %arg4: memref<128x128xbf16, #tpu.memory_space<vmem>>, %arg5: memref<1x128xf32, #tpu.memory_space<vmem>>, %arg6: memref<16x128xf32, #tpu.memory_space<vmem>>, %arg7: memref<16x128xf32, #tpu.memory_space<vmem>>, %arg8: memref<16x128xf32, #tpu.memory_space<vmem>>) attributes {dimension_semantics = [#tpu.dimension_semantics<parallel>, #tpu.dimension_semantics<parallel>, #tpu.dimension_semantics<arbitrary>], iteration_bounds = array<i64: 1, 1, 1>, scalar_prefetch = 0 : i64, scratch_operands = 1 : i64, tpu.core_type = #tpu.core_type<tc>, window_params = [{transform_indices = @transform_0, window_bounds = array<i64: 16, 128>}, {transform_indices = @transform_1, window_bounds = array<i64: 128, 128>}, {transform_indices = @transform_2, window_bounds = array<i64: 1, 128>}, {transform_indices = @transform_3, window_bounds = array<i64: 16, 128>}, {transform_indices = @transform_4, window_bounds = array<i64: 16, 128>}]} {
    %c0_i32 = arith.constant 0 : i32
    %0 = arith.cmpi eq, %arg2, %c0_i32 : i32
    %1 = arith.extui %0 : i1 to i32
    %c0_i32_0 = arith.constant 0 : i32
    %2 = arith.cmpi ne, %1, %c0_i32_0 : i32
    scf.if %2 {
      %c0_10 = arith.constant 0 : index
      %c0_11 = arith.constant 0 : index
      %12 = vector.load %arg6[%c0_10, %c0_11] : memref<16x128xf32, #tpu.memory_space<vmem>>, vector<16x128xf32>
      %c0_12 = arith.constant 0 : index
      %c0_13 = arith.constant 0 : index
      %13 = vector.load %arg5[%c0_12, %c0_13] : memref<1x128xf32, #tpu.memory_space<vmem>>, vector<1x128xf32>
      %14 = vector.broadcast %13 : vector<1x128xf32> to vector<16x128xf32>
      %15 = arith.addf %12, %14 : vector<16x128xf32>
      %c0_14 = arith.constant 0 : index
      %c0_15 = arith.constant 0 : index
      %16 = vector.load %arg8[%c0_14, %c0_15] : memref<16x128xf32, #tpu.memory_space<vmem>>, vector<16x128xf32>
      tpu.vector_store %arg8[%c0_14, %c0_15], %15 {strides = array<i32>} : memref<16x128xf32, #tpu.memory_space<vmem>>, vector<16x128xf32>,
    } else {
    }
    %c0 = arith.constant 0 : index
    %c0_1 = arith.constant 0 : index
    %3 = vector.load %arg8[%c0, %c0_1] : memref<16x128xf32, #tpu.memory_space<vmem>>, vector<16x128xf32>
    %c0_2 = arith.constant 0 : index
    %c0_3 = arith.constant 0 : index
    %4 = vector.load %arg3[%c0_2, %c0_3] : memref<16x128xbf16, #tpu.memory_space<vmem>>, vector<16x128xbf16>
    %c0_4 = arith.constant 0 : index
    %c0_5 = arith.constant 0 : index
    %5 = vector.load %arg4[%c0_4, %c0_5] : memref<128x128xbf16, #tpu.memory_space<vmem>>, vector<128x128xbf16>
    %cst = arith.constant dense<0.000000e+00> : vector<16x128xf32>
    %6 = tpu.matmul %4, %5, %cst {dimension_numbers = #tpu.dot_dimension_numbers<[1], [0], [0], [1], [0, 0, 1, 1], [], []>} : vector<16x128xbf16>, vector<128x128xbf16>, vector<16x128xf32> -> vector<16x128xf32>
    %7 = arith.addf %3, %6 : vector<16x128xf32>
    %c0_6 = arith.constant 0 : index
    %c0_7 = arith.constant 0 : index
    %8 = vector.load %arg8[%c0_6, %c0_7] : memref<16x128xf32, #tpu.memory_space<vmem>>, vector<16x128xf32>
    tpu.vector_store %arg8[%c0_6, %c0_7], %7 {strides = array<i32>} : memref<16x128xf32, #tpu.memory_space<vmem>>, vector<16x128xf32>,
    %c0_i32_8 = arith.constant 0 : i32
    %9 = arith.cmpi eq, %arg2, %c0_i32_8 : i32
    %10 = arith.extui %9 : i1 to i32
    %c0_i32_9 = arith.constant 0 : i32
    %11 = arith.cmpi ne, %10, %c0_i32_9 : i32
    scf.if %11 {
      %c0_10 = arith.constant 0 : index
      %c0_11 = arith.constant 0 : index
      %12 = vector.load %arg8[%c0_10, %c0_11] : memref<16x128xf32, #tpu.memory_space<vmem>>, vector<16x128xf32>
      %c0_12 = arith.constant 0 : index
      %c0_13 = arith.constant 0 : index
      %13 = vector.load %arg7[%c0_12, %c0_13] : memref<16x128xf32, #tpu.memory_space<vmem>>, vector<16x128xf32>
      tpu.vector_store %arg7[%c0_12, %c0_13], %12 {strides = array<i32>} : memref<16x128xf32, #tpu.memory_space<vmem>>, vector<16x128xf32>,
    } else {
    }
    return
  }
  func.func @transform_0(%arg0: i32, %arg1: i32, %arg2: i32) -> (i32, i32) {
    %c0_i32 = arith.constant 0 : i32
    return %arg0, %arg2 : i32, i32
  }
  func.func @transform_1(%arg0: i32, %arg1: i32, %arg2: i32) -> (i32, i32) {
    %c0_i32 = arith.constant 0 : i32
    return %arg2, %arg1 : i32, i32
  }
  func.func @transform_2(%arg0: i32, %arg1: i32, %arg2: i32) -> (i32, i32) {
    %c0_i32 = arith.constant 0 : i32
    %c0_i32_0 = arith.constant 0 : i32
    return %c0_i32, %arg1 : i32, i32
  }
  func.func @transform_3(%arg0: i32, %arg1: i32, %arg2: i32) -> (i32, i32) {
    %c0_i32 = arith.constant 0 : i32
    return %arg0, %arg1 : i32, i32
  }
  func.func @transform_4(%arg0: i32, %arg1: i32, %arg2: i32) -> (i32, i32) {
    %c0_i32 = arith.constant 0 : i32
    return %arg0, %arg1 : i32, i32
  }
}

</mosaic_0001>

<llo_original>
// kernel: gext_output.1
$region0: #{gext_output.1}
  #allocation0 [shape = 'u32[]', space=smem, size = 0x4, offset = 0x4, fixed_abs, tag = 'smem constant byte address 0x4 - core index']
  #allocation1 [shape = 'u32[144,128]{1,0:T(1,128)}', space=vmem, size = 0x12000, scoped, tag = 'internal scratch']
  #allocation2 [shape = 'f32[16,128]{1,0:T(8,128)}', space=vmem, size = 0x2000, scoped, tag = 'scratch operand']
  %s0 = inlined_call_operand.vmem [shape: bf16[16,128], index: 0, kind: input, shape index: {}]
  %s1 = inlined_call_operand.vmem [shape: bf16[128,128], index: 1, kind: input, shape index: {}]
  %s2 = inlined_call_operand.vmem [shape: f32[1,128], index: 2, kind: input, shape index: {}]
  %s3 = inlined_call_operand.vmem [shape: f32[16,128], index: 3, kind: input, shape index: {}]
  %s4 = inlined_call_operand.vmem [shape: f32[16,128], index: 4, kind: output, shape index: {}]
  %s5 = sld [smem:[#allocation0]]
  $region34: #{gext_output.1} parent=0
    _
  %s7 = ssub.s32 1, %s5
  %s8 = scalar_select 0, %s7, %s5
  // Predicated region
  $region2: #{gext_output.1} parent=0 // pred_check
    _
  $region3: #{gext_output.1} parent=0 // pred_check_branch
    %10 = sbr.rel (0) target = $region5
  $region4: #{gext_output.1} parent=0 // pred_region
    _
  $region5: #{gext_output.1} parent=0 // pred_fallthru
    _
  // Predicated region
  $region6: #{gext_output.1} parent=0 // pred_check
    _
  $region7: #{gext_output.1} parent=0 // pred_check_branch
    %12 = sbr.rel (0) target = $region9
  $region8: #{gext_output.1} parent=0 // pred_region
    _
  $region9: #{gext_output.1} parent=0 // pred_fallthru
    _
  // Predicated region
  $region10: #{gext_output.1} parent=0 // pred_check
    _
  $region11: #{gext_output.1} parent=0 // pred_check_branch
    %14 = sbr.rel (0) target = $region13
  $region12: #{gext_output.1} parent=0 // pred_region
    _
  $region13: #{gext_output.1} parent=0 // pred_fallthru
    _
  // Predicated region
  $region14: #{gext_output.1} parent=0 // pred_check
    _
  $region15: #{gext_output.1} parent=0 // pred_check_branch
    %16 = sbr.rel (0) target = $region17
  $region16: #{gext_output.1} parent=0 // pred_region
    _
  $region17: #{gext_output.1} parent=0 // pred_fallthru
    _
  %p18 = scmp.eq.s32.totalorder 0, 0
  // Predicated region
  $region18: #{gext_output.1} parent=0 // pred_check
    %p19 = pneg %p18
  $region19: #{gext_output.1} parent=0 // pred_check_branch
    %21 = sbr.rel (%p19) target = $region21
  $region20: #{gext_output.1} parent=0 // pred_region
    %v22 = vld [vmem:[%s3] sm:$0xff]
    %v23 = vld [vmem:[%s3 + $0x8] sm:$0xff]
    %v24 = vld [vmem:[%s2] sm:$0x1]
    %v26 = vlaneseq
    %v27 = vshrl.u32 %v26, 7
    %v28 = vsub.s32 0, %v27
    %v29 = vrot.slane %v24, %v28
    %v31 = vadd.f32 %v22, %v29
    %v32 = vadd.f32 %v23, %v29
    %33 = vst [vmem:[#allocation2] sm:$0xff] %v31
    %34 = vst [vmem:[#allocation2 + $0x8] sm:$0xff] %v32
  $region21: #{gext_output.1} parent=0 // pred_fallthru
    _
  %v35 = vld [vmem:[#allocation2] sm:$0xff]
  %v36 = vld [vmem:[#allocation2 + $0x8] sm:$0xff]
  %v37 = vld [vmem:[%s0] sm:$0xf]
  %v38 = vld [vmem:[%s0 + $0x4] sm:$0xf]
  %v39 = vld [vmem:[%s1] sm:$0xf]
  %v40 = vld [vmem:[%s1 + $0x4] sm:$0xf]
  %v41 = vld [vmem:[%s1 + $0x8] sm:$0xf]
  %v42 = vld [vmem:[%s1 + $0xc] sm:$0xf]
  %v43 = vld [vmem:[%s1 + $0x10] sm:$0xf]
  %v44 = vld [vmem:[%s1 + $0x14] sm:$0xf]
  %v45 = vld [vmem:[%s1 + $0x18] sm:$0xf]
  %v46 = vld [vmem:[%s1 + $0x1c] sm:$0xf]
  %v47 = vld [vmem:[%s1 + $0x20] sm:$0xf]
  %v48 = vld [vmem:[%s1 + $0x24] sm:$0xf]
  %v49 = vld [vmem:[%s1 + $0x28] sm:$0xf]
  %v50 = vld [vmem:[%s1 + $0x2c] sm:$0xf]
  %v51 = vld [vmem:[%s1 + $0x30] sm:$0xf]
  %v52 = vld [vmem:[%s1 + $0x34] sm:$0xf]
  %v53 = vld [vmem:[%s1 + $0x38] sm:$0xf]
  %v54 = vld [vmem:[%s1 + $0x3c] sm:$0xf]
  %v57 = vunpack.c.l.b16 %v37
  %v58 = vunpack.c.l.b16 %v38
  %v59 = vpack.c.b16 %v58, %v57
  %v77 = vunpack.c.l.b16 %v39
  %v78 = vunpack.c.l.b16 %v40
  %v79 = vunpack.c.l.b16 %v41
  %v80 = vunpack.c.l.b16 %v42
  %v81 = vunpack.c.l.b16 %v43
  %v82 = vunpack.c.l.b16 %v44
  %v83 = vunpack.c.l.b16 %v45
  %v84 = vunpack.c.l.b16 %v46
  %v85 = vunpack.c.l.b16 %v47
  %v86 = vunpack.c.l.b16 %v48
  %v87 = vunpack.c.l.b16 %v49
  %v88 = vunpack.c.l.b16 %v50
  %v89 = vunpack.c.l.b16 %v51
  %v90 = vunpack.c.l.b16 %v52
  %v91 = vunpack.c.l.b16 %v53
  %v92 = vunpack.c.l.b16 %v54
  %v93 = vpack.c.b16 %v78, %v77
  %v94 = vpack.c.b16 %v80, %v79
  %v95 = vpack.c.b16 %v82, %v81
  %v96 = vpack.c.b16 %v84, %v83
  %v97 = vpack.c.b16 %v86, %v85
  %v98 = vpack.c.b16 %v88, %v87
  %v99 = vpack.c.b16 %v90, %v89
  %v100 = vpack.c.b16 %v92, %v91
  %109 = vmatprep.subr.bf16.mxu0 0
  %110 = vmatpush1.bf16.msra.mxu0 %v93
  %111 = vmatprep.subr.bf16.mxu0 0
  %112 = vmatpush1.bf16.msra.mxu0 %v94
  %113 = vmatprep.subr.bf16.mxu0 0
  %114 = vmatpush1.bf16.msra.mxu0 %v95
  %115 = vmatprep.subr.bf16.mxu0 0
  %116 = vmatpush1.bf16.msra.mxu0 %v96
  %117 = vmatprep.subr.bf16.mxu0 0
  %118 = vmatpush1.bf16.msra.mxu0 %v97
  %119 = vmatprep.subr.bf16.mxu0 0
  %120 = vmatpush1.bf16.msra.mxu0 %v98
  %121 = vmatprep.subr.bf16.mxu0 0
  %122 = vmatpush1.bf16.msra.mxu0 %v99
  %123 = vmatprep.subr.bf16.mxu0 0
  %124 = vmatpush1.bf16.msra.mxu0 %v100
  %125 = vmatprep.subr.bf16.mxu0 0
  %126 = vmatpush1.bf16.msra.mxu0 0
  %127 = vmatprep.subr.bf16.mxu0 0
  %128 = vmatpush1.bf16.msra.mxu0 0
  %129 = vmatprep.subr.bf16.mxu0 0
  %130 = vmatpush1.bf16.msra.mxu0 0
  %131 = vmatprep.subr.bf16.mxu0 0
  %132 = vmatpush1.bf16.msra.mxu0 0
  %133 = vmatprep.subr.bf16.mxu0 0
  %134 = vmatpush1.bf16.msra.mxu0 0
  %135 = vmatprep.subr.bf16.mxu0 0
  %136 = vmatpush1.bf16.msra.mxu0 0
  %137 = vmatprep.subr.bf16.mxu0 0
  %138 = vmatpush1.bf16.msra.mxu0 0
  %139 = vmatprep.subr.bf16.mxu0 0
  %140 = vmatpush1.bf16.msra.mxu0 0
  %141 = vmatprep.mubr.bf16.mxu0 0
  %142 = vmatmul.mubr.bf16.gmra.mrb[0].mxu0 %v59
  %v143 = vpop.f32.mrb[0].mxu0
  %v144 = vadd.f32 0.0, %v143
  %v145 = vpop.f32.mrb[0].mxu0
  %v146 = vpop.f32.mrb[0].mxu0
  %v147 = vadd.f32 0.0, %v146
  %v148 = vpop.f32.mrb[0].mxu0
  %149 = vdwg.mxu0
  %v150 = vadd.f32 %v35, %v144
  %v151 = vadd.f32 %v36, %v147
  %152 = vst [vmem:[#allocation2] sm:$0xff] %v150
  %153 = vst [vmem:[#allocation2 + $0x8] sm:$0xff] %v151
  // Predicated region
  $region22: #{gext_output.1} parent=0 // pred_check
    %p154 = pneg %p18
  $region23: #{gext_output.1} parent=0 // pred_check_branch
    %156 = sbr.rel (%p154) target = $region25
  $region24: #{gext_output.1} parent=0 // pred_region
    %v157 = vld [vmem:[#allocation2] sm:$0xff]
    %v158 = vld [vmem:[#allocation2 + $0x8] sm:$0xff]
    %159 = vst [vmem:[%s4] sm:$0xff] %v157
    %160 = vst [vmem:[%s4 + $0x8] sm:$0xff] %v158
  $region25: #{gext_output.1} parent=0 // pred_fallthru
    _
  // Predicated region
  $region26: #{gext_output.1} parent=0 // pred_check
    _
  $region27: #{gext_output.1} parent=0 // pred_check_branch
    %162 = sbr.rel (0) target = $region29
  $region28: #{gext_output.1} parent=0 // pred_region
    _
  $region29: #{gext_output.1} parent=0 // pred_fallthru
    _
  // Predicated region
  $region30: #{gext_output.1} parent=0 // pred_check
    _
  $region31: #{gext_output.1} parent=0 // pred_check_branch
    %164 = sbr.rel (0) target = $region33
  $region32: #{gext_output.1} parent=0 // pred_region
    _
  $region33: #{gext_output.1} parent=0 // pred_fallthru
    _

</llo_original>
